<compile_context>
chip_gen: v7x
topology: tpu7x:2x2x1
jax: 0.10.0
libtpu: 0.0.40
codegen_flags: <defaults>
</compile_context>

<pallas_src>
import jax
import jax.numpy as jnp
from jax.experimental import pallas as pl
from jax.experimental.pallas import tpu as pltpu


def _round_up(v, m):
    return ((v + m - 1) // m) * m


def _conv_kernel(w_ref, b_ref, p_ref, o_ref):
    # w_ref: (O_pad, K_pad)   bf16   im2col weight slab (same block every step)
    # b_ref: (O_pad, 1)       f32    bias column (same block every step)
    # p_ref: (K_pad, R_pad)   bf16   im2col patches for one image
    # o_ref: (O_pad, R_pad)   f32    channel-major output (NCHW-friendly)
    acc = jnp.dot(w_ref[...], p_ref[...], preferred_element_type=jnp.float32)
    o_ref[...] = acc + b_ref[...]          # single aligned full-block store


def conv2d_pallas(x_nchw, weight_ochw, bias, *, interpret=False):
    """Equivalent of F.conv2d(x, weight, bias, stride=1, padding=0), NCHW in/out."""
    n, c, h, w = x_nchw.shape
    o, c_w, kh, kw = weight_ochw.shape
    assert c_w == c
    oh, ow = h - kh + 1, w - kw + 1
    r = oh * ow                     # valid output pixels per image
    k = c * kh * kw                 # contraction depth (27)

    o_pad = _round_up(o, 128)       # sublane dim of output (100 -> 128, not 256)
    r_pad = _round_up(r, 128)       # lane dim of output (196 -> 256, unmasked vst)
    k_pad = _round_up(k, 8)         # fused contraction depth (27 -> 32)

    # --- wrapper-side layout prep (each array is only a few KB) ---
    # im2col directly from NCHW; k index ordered (kh, kw, c): (N, K, OH*OW)
    cols = []
    for i in range(kh):
        for j in range(kw):
            cols.append(x_nchw[:, :, i:i + oh, j:j + ow])        # (N, C, OH, OW)
    patches = jnp.concatenate(cols, axis=1).reshape(n, kh * kw * c, r)
    patches = jnp.pad(patches, ((0, 0), (0, k_pad - k), (0, r_pad - r)))
    patches = patches.astype(jnp.bfloat16)

    # weight: (O, C, KH, KW) -> (O, KH, KW, C) -> (O, K), matching k order above
    w_mat = jnp.transpose(weight_ochw, (0, 2, 3, 1)).reshape(o, k)
    w_mat = jnp.pad(w_mat, ((0, o_pad - o), (0, k_pad - k))).astype(jnp.bfloat16)

    # bias: (O,) -> (O_pad, 1) column, kept f32 (bias add stays f32 on the VPU)
    b_mat = jnp.pad(bias.astype(jnp.float32), (0, o_pad - o)).reshape(o_pad, 1)

    out_full = pl.pallas_call(
        _conv_kernel,
        grid=(n,),
        out_shape=jax.ShapeDtypeStruct((n, o_pad, r_pad), jnp.float32),
        in_specs=[
            pl.BlockSpec((o_pad, k_pad), lambda b: (0, 0)),           # weights
            pl.BlockSpec((o_pad, 1), lambda b: (0, 0)),               # bias
            pl.BlockSpec((None, k_pad, r_pad), lambda b: (b, 0, 0)),  # patches
        ],
        out_specs=pl.BlockSpec((None, o_pad, r_pad), lambda b: (b, 0, 0)),
        compiler_params=pltpu.CompilerParams(
            dimension_semantics=("parallel",)),   # v7x: one image per TensorCore
        interpret=interpret,
    )(w_mat, b_mat, patches)

    # (N, O_pad, R_pad) -> drop padded channels/pixels -> NCHW (no transpose)
    return out_full[:, :o, :r].reshape(n, o, oh, ow)


if __name__ == "__main__":
    key = jax.random.PRNGKey(0)
    k_x, k_w, k_b = jax.random.split(key, 3)

    # Shapes consistent with the module: Conv2d(3, 100, 3)
    N, C, H, W = 2, 3, 16, 16
    O, KH, KW = 100, 3, 3

    x = jax.random.normal(k_x, (N, C, H, W), dtype=jnp.float32)
    fan_in = C * KH * KW
    bound = 1.0 / (fan_in ** 0.5)
    weight = jax.random.uniform(k_w, (O, C, KH, KW), minval=-bound, maxval=bound,
                                dtype=jnp.float32)
    bias = jax.random.uniform(k_b, (O,), minval=-bound, maxval=bound,
                              dtype=jnp.float32)

    out = conv2d_pallas(x, weight, bias)
    out = jax.block_until_ready(out)
    assert out.shape == (N, O, H - KH + 1, W - KW + 1), out.shape

    # Reference: XLA conv with the same bf16 operand precision as the kernel
    # (kernel multiplies bf16 operands on the MXU, accumulates in f32).
    x_bf = x.astype(jnp.bfloat16).astype(jnp.float32)
    w_bf = weight.astype(jnp.bfloat16).astype(jnp.float32)
    ref = jax.lax.conv_general_dilated(
        x_bf, w_bf, window_strides=(1, 1), padding="VALID",
        dimension_numbers=("NCHW", "OIHW", "NCHW"),
    ) + bias.reshape(1, O, 1, 1)
    max_err = float(jnp.max(jnp.abs(out - ref)))
    assert jnp.allclose(out, ref, atol=2e-3, rtol=2e-3), max_err

    print("KERNEL_OK")
</pallas_src>

<mosaic_0001>
module attributes {stable_mosaic.version = 11 : i64} {
  func.func @_conv_kernel(%arg0: i32, %arg1: memref<128x32xbf16, #tpu.memory_space<vmem>>, %arg2: memref<128x1xf32, #tpu.memory_space<vmem>>, %arg3: memref<1x32x256xbf16, #tpu.memory_space<vmem>>, %arg4: memref<1x128x256xf32, #tpu.memory_space<vmem>>) attributes {dimension_semantics = [#tpu.dimension_semantics<parallel>], iteration_bounds = array<i64: 2>, scalar_prefetch = 0 : i64, scratch_operands = 0 : i64, tpu.core_type = #tpu.core_type<tc>, window_params = [{pipeline_mode = #tpu.pipeline_mode<synchronous>, transform_indices = @transform_0, window_bounds = array<i64: 128, 32>}, {pipeline_mode = #tpu.pipeline_mode<synchronous>, transform_indices = @transform_1, window_bounds = array<i64: 128, 1>}, {transform_indices = @transform_2, window_bounds = array<i64: 1, 32, 256>}, {transform_indices = @transform_3, window_bounds = array<i64: 1, 128, 256>}]} {
    %c0 = arith.constant 0 : index
    %c0_0 = arith.constant 0 : index
    %0 = vector.load %arg1[%c0, %c0_0] : memref<128x32xbf16, #tpu.memory_space<vmem>>, vector<128x32xbf16>
    %c0_1 = arith.constant 0 : index
    %c0_2 = arith.constant 0 : index
    %c0_3 = arith.constant 0 : index
    %1 = vector.load %arg3[%c0_1, %c0_2, %c0_3] : memref<1x32x256xbf16, #tpu.memory_space<vmem>>, vector<1x32x256xbf16>
    %2 = vector.shape_cast %1 : vector<1x32x256xbf16> to vector<32x256xbf16>
    %cst = arith.constant dense<0.000000e+00> : vector<128x256xf32>
    %3 = tpu.matmul %0, %2, %cst {dimension_numbers = #tpu.dot_dimension_numbers<[1], [0], [0], [1], [0, 0, 1, 1], [], []>} : vector<128x32xbf16>, vector<32x256xbf16>, vector<128x256xf32> -> vector<128x256xf32>
    %c0_4 = arith.constant 0 : index
    %c0_5 = arith.constant 0 : index
    %4 = vector.load %arg2[%c0_4, %c0_5] : memref<128x1xf32, #tpu.memory_space<vmem>>, vector<128x1xf32>
    %5 = vector.broadcast %4 : vector<128x1xf32> to vector<128x256xf32>
    %6 = arith.addf %3, %5 : vector<128x256xf32>
    %c0_6 = arith.constant 0 : index
    %c0_7 = arith.constant 0 : index
    %c0_8 = arith.constant 0 : index
    %7 = vector.load %arg4[%c0_6, %c0_7, %c0_8] : memref<1x128x256xf32, #tpu.memory_space<vmem>>, vector<1x128x256xf32>
    %8 = vector.shape_cast %7 : vector<1x128x256xf32> to vector<128x256xf32>
    %9 = vector.shape_cast %6 : vector<128x256xf32> to vector<1x128x256xf32>
    tpu.vector_store %arg4[%c0_6, %c0_7, %c0_8], %9 {strides = array<i32>} : memref<1x128x256xf32, #tpu.memory_space<vmem>>, vector<1x128x256xf32>,
    return
  }
  func.func @transform_0(%arg0: i32) -> (i32, i32) {
    %c0_i32 = arith.constant 0 : i32
    %c0_i32_0 = arith.constant 0 : i32
    %c0_i32_1 = arith.constant 0 : i32
    return %c0_i32, %c0_i32_0 : i32, i32
  }
  func.func @transform_1(%arg0: i32) -> (i32, i32) {
    %c0_i32 = arith.constant 0 : i32
    %c0_i32_0 = arith.constant 0 : i32
    %c0_i32_1 = arith.constant 0 : i32
    return %c0_i32, %c0_i32_0 : i32, i32
  }
  func.func @transform_2(%arg0: i32) -> (i32, i32, i32) {
    %c0_i32 = arith.constant 0 : i32
    %c0_i32_0 = arith.constant 0 : i32
    %c0_i32_1 = arith.constant 0 : i32
    return %arg0, %c0_i32, %c0_i32_0 : i32, i32, i32
  }
  func.func @transform_3(%arg0: i32) -> (i32, i32, i32) {
    %c0_i32 = arith.constant 0 : i32
    %c0_i32_0 = arith.constant 0 : i32
    %c0_i32_1 = arith.constant 0 : i32
    return %arg0, %c0_i32, %c0_i32_0 : i32, i32, i32
  }
}

</mosaic_0001>

<llo_original>
// kernel: tpu_custom_call.1
$region0: #{tpu_custom_call.1}
  #allocation0 [shape = 'u32[]', space=smem, size = 0x4, offset = 0x4, fixed_abs, tag = 'smem constant byte address 0x4 - core index']
  #allocation1 [shape = 'u32[144,128]{1,0:T(1,128)}', space=vmem, size = 0x12000, scoped, tag = 'internal scratch']
  %s0 = inlined_call_operand.vmem [shape: bf16[128,32], index: 0, kind: input, shape index: {}]
  %s1 = inlined_call_operand.vmem [shape: f32[128,1], index: 1, kind: input, shape index: {}]
  %s2 = inlined_call_operand.vmem [shape: bf16[2,32,256], index: 2, kind: input, shape index: {}]
  %s3 = inlined_call_operand.hbm [shape: f32[2,128,256], index: 3, kind: output, shape index: {}]
  %s4 = sld [smem:[#allocation0]]
  $region45: #{tpu_custom_call.1} parent=0
    _
  %s6 = ssub.s32 1, %s4
  %s7 = scalar_select 0, %s6, %s4
  $region1: #{tpu_custom_call.1} parent=0
    #allocation2 [shape = 'u8[262144]{0}', space=vmem, size = 0x40000, scoped, tag = 'output window, operand 0']
    #allocation3 [shape = 's32[2]{0}', space=sflag, size = 0x8, scoped, tag = 'scoped memory for tpu_custom_call.1']
    %8 = vsyncpa [#allocation3], 0
    %s9 = scalar_lea.sflag [#allocation3], 1
    %10 = vsyncpa %s9, 0
    loop: start=0, step=1, limit=4
    $region2: #{tpu_custom_call.1} parent=1 // loop_pre_header
      _
    $region3: #{tpu_custom_call.1} parent=1 // loop_header
      %s12 = sphi 0, %s16
      %p13 = scmp.ge.s32.totalorder %s12, 4
      %s20 = sphi 0, %s20
      %s22 = sphi 0, %s20
      %s23 = sphi 0, %s22
      %s37 = sphi 0, %s23
      %s41 = sphi 0, %s41
      %s43 = sphi 0, %s41
      %s44 = sphi 0, %s43
      %s58 = sphi 0, %s44
      %s64 = sphi 0, %s66
      %s67 = sphi 0, %s64
      %s68 = sphi 0, %s67
      %s84 = sphi 0, %s68
      %s90 = sphi 0, %s92
      %s93 = sphi 0, %s90
      %s94 = sphi 0, %s93
      %s110 = sphi 0, %s94
    $region4: #{tpu_custom_call.1} parent=1 // loop_header_branch
      %15 = sbr.rel (%p13) target = $region8
    $region5: #{tpu_custom_call.1} parent=1 // loop_body
      %s17 = ssub.s32 %s12, 1
      %s18 = ssub.s32 %s12, 2
      %s19 = sadd.s32 %s12, 1
      %s21 = sadd.s32 %s20, 1
      %p24 = scmp.eq.s32.totalorder %s12, 1
      %p25 = scmp.ne.s32.totalorder %s20, %s22
      %p26 = scmp.eq.s32.totalorder %s12, 0
      %p27 = por %p25, %p26
      %p28 = scmp.ne.s32.totalorder %s20, %s22
      %p29 = scmp.eq.s32.totalorder %s17, 1
      %p30 = por %p28, %p29
      %p31 = scmp.ne.s32.totalorder %s22, %s23
      %p32 = scmp.eq.s32.totalorder %s17, 0
      %p33 = por %p31, %p32
      %p34 = scmp.ne.s32.totalorder %s22, %s23
      %p35 = scmp.eq.s32.totalorder %s18, 1
      %p36 = por %p34, %p35
      %p38 = scmp.ne.s32.totalorder %s23, %s37
      %p39 = scmp.eq.s32.totalorder %s18, 0
      %p40 = por %p38, %p39
      %s42 = sadd.s32 %s41, 1
      %p45 = scmp.eq.s32.totalorder %s12, 1
      %p46 = scmp.ne.s32.totalorder %s41, %s43
      %p47 = scmp.eq.s32.totalorder %s12, 0
      %p48 = por %p46, %p47
      %p49 = scmp.ne.s32.totalorder %s41, %s43
      %p50 = scmp.eq.s32.totalorder %s17, 1
      %p51 = por %p49, %p50
      %p52 = scmp.ne.s32.totalorder %s43, %s44
      %p53 = scmp.eq.s32.totalorder %s17, 0
      %p54 = por %p52, %p53
      %p55 = scmp.ne.s32.totalorder %s43, %s44
      %p56 = scmp.eq.s32.totalorder %s18, 1
      %p57 = por %p55, %p56
      %p59 = scmp.ne.s32.totalorder %s44, %s58
      %p60 = scmp.eq.s32.totalorder %s18, 0
      %p61 = por %p59, %p60
      %s62 = ssub.s32 %s12, %s19
      %p63 = scmp.eq.s32.totalorder %s62, 0
      %s65 = sadd.s32 %s64, 1
      %s66 = scalar_select %p63, %s64, %s65
      %p69 = pneg %p63
      %p70 = scmp.eq.s32.totalorder %s12, 1
      %p71 = por %p69, %p70
      %p72 = scmp.ne.s32.totalorder %s64, %s67
      %p73 = scmp.eq.s32.totalorder %s12, 0
      %p74 = por %p72, %p73
      %p75 = scmp.ne.s32.totalorder %s64, %s67
      %p76 = scmp.eq.s32.totalorder %s17, 1
      %p77 = por %p75, %p76
      %p78 = scmp.ne.s32.totalorder %s67, %s68
      %p79 = scmp.eq.s32.totalorder %s17, 0
      %p80 = por %p78, %p79
      %p81 = scmp.ne.s32.totalorder %s67, %s68
      %p82 = scmp.eq.s32.totalorder %s18, 1
      %p83 = por %p81, %p82
      %p85 = scmp.ne.s32.totalorder %s68, %s84
      %p86 = scmp.eq.s32.totalorder %s18, 0
      %p87 = por %p85, %p86
      %s88 = ssub.s32 %s12, %s19
      %p89 = scmp.eq.s32.totalorder %s88, 0
      %s91 = sadd.s32 %s90, 1
      %s92 = scalar_select %p89, %s90, %s91
      %p95 = pneg %p89
      %p96 = scmp.eq.s32.totalorder %s12, 1
      %p97 = por %p95, %p96
      %p98 = scmp.ne.s32.totalorder %s90, %s93
      %p99 = scmp.eq.s32.totalorder %s12, 0
      %p100 = por %p98, %p99
      %p101 = scmp.ne.s32.totalorder %s90, %s93
      %p102 = scmp.eq.s32.totalorder %s17, 1
      %p103 = por %p101, %p102
      %p104 = scmp.ne.s32.totalorder %s93, %s94
      %p105 = scmp.eq.s32.totalorder %s17, 0
      %p106 = por %p104, %p105
      %p107 = scmp.ne.s32.totalorder %s93, %s94
      %p108 = scmp.eq.s32.totalorder %s18, 1
      %p109 = por %p107, %p108
      %p111 = scmp.ne.s32.totalorder %s94, %s110
      %p112 = scmp.eq.s32.totalorder %s18, 0
      %p113 = por %p111, %p112
      %p114 = scmp.le.s32.totalorder 1, %s12
      %p115 = scmp.lt.s32.totalorder %s12, 3
      %p116 = pnand %p114, %p115
      %p117 = pneg %p116
      // Predicated region
      $region9: #{tpu_custom_call.1} parent=5 // pred_check
        _
      $region10: #{tpu_custom_call.1} parent=5 // pred_check_branch
        %119 = sbr.rel (%p116) target = $region12
      $region11: #{tpu_custom_call.1} parent=5 // pred_region
        %s120 = ssub.s32 %s12, 1
        // Predicated region
        $region13: #{tpu_custom_call.1} parent=11 // pred_check
          %p121 = pneg %p33
        $region14: #{tpu_custom_call.1} parent=11 // pred_check_branch
          %123 = sbr.rel (%p121) target = $region16
        $region15: #{tpu_custom_call.1} parent=11 // pred_region
          _
        $region16: #{tpu_custom_call.1} parent=11 // pred_fallthru
          _
        // Predicated region
        $region17: #{tpu_custom_call.1} parent=11 // pred_check
          %p124 = pneg %p54
        $region18: #{tpu_custom_call.1} parent=11 // pred_check_branch
          %126 = sbr.rel (%p124) target = $region20
        $region19: #{tpu_custom_call.1} parent=11 // pred_region
          _
        $region20: #{tpu_custom_call.1} parent=11 // pred_fallthru
          _
      $region12: #{tpu_custom_call.1} parent=5 // pred_fallthru
        _
      %p127 = scmp.lt.s32.totalorder %s12, 2
      // Predicated region
      $region21: #{tpu_custom_call.1} parent=5 // pred_check
        %p128 = pneg %p127
      $region22: #{tpu_custom_call.1} parent=5 // pred_check_branch
        %130 = sbr.rel (%p128) target = $region24
      $region23: #{tpu_custom_call.1} parent=5 // pred_region
        // Predicated region
        $region25: #{tpu_custom_call.1} parent=23 // pred_check
          %p131 = pneg %p74
        $region26: #{tpu_custom_call.1} parent=23 // pred_check_branch
          %133 = sbr.rel (%p131) target = $region28
        $region27: #{tpu_custom_call.1} parent=23 // pred_region
          %p134 = scmp.lt.s32.totalorder %s12, 1
          %s135 = scalar_select %p134, %s12, 1
          %s136 = smul.addr %s135, 8
          %s137 = smul.addr %s136, 4
          %s138 = scalar_lea.vmem %s2, %s137
        $region28: #{tpu_custom_call.1} parent=23 // pred_fallthru
          _
      $region24: #{tpu_custom_call.1} parent=5 // pred_fallthru
        _
      %p139 = scmp.le.s32.totalorder 1, %s12
      %p140 = scmp.lt.s32.totalorder %s12, 3
      %p141 = pnand %p139, %p140
      %p142 = pneg %p141
      // Predicated region
      $region29: #{tpu_custom_call.1} parent=5 // pred_check
        _
      $region30: #{tpu_custom_call.1} parent=5 // pred_check_branch
        %144 = sbr.rel (%p141) target = $region32
      $region31: #{tpu_custom_call.1} parent=5 // pred_region
        %s145 = ssub.s32 %s12, 1
        %p146 = pneg %p33
        %p147 = pneg %p30
        %p148 = pneg %p54
        %p149 = pneg %p51
        %p150 = scmp.lt.s32.totalorder %s17, 1
        %s151 = scalar_select %p150, %s17, 1
        %s152 = smul.addr %s151, 8
        %s153 = smul.addr %s152, 4
        %s154 = scalar_lea.vmem %s2, %s153
        %p155 = pneg %p80
        %p156 = pneg %p77
        %p157 = pneg %p106
        %p158 = pneg %p103
        %s159 = sand.u32 %s93, 1
        %s160 = scalar_lea.sflag [#allocation3], %s159
        %s161 = sand.u32 %s93, 1
        %s162 = smul.addr %s161, 256
        %s163 = scalar_lea.vmem [#allocation2], %s162
        %p164 = scmp.lt.s32.totalorder %s17, 1
        %s165 = scalar_select %p164, %s17, 1
        %s166 = smul.addr %s165, 8
        %s167 = smul.addr %s166, 4
        %s168 = scalar_lea.vmem %s2, %s167
        %v170 = vld [vmem:[%s0] sm:$0xf]
        %v171 = vld [vmem:[%s0 + $0x4] sm:$0xf]
        %v172 = vld [vmem:[%s0 + $0x8] sm:$0xf]
        %v173 = vld [vmem:[%s0 + $0xc] sm:$0xf]
        %v174 = vld [vmem:[%s0 + $0x10] sm:$0xf]
        %v175 = vld [vmem:[%s0 + $0x14] sm:$0xf]
        %v176 = vld [vmem:[%s0 + $0x18] sm:$0xf]
        %v177 = vld [vmem:[%s0 + $0x1c] sm:$0xf]
        %v178 = vld [vmem:[%s0 + $0x20] sm:$0xf]
        %v179 = vld [vmem:[%s0 + $0x24] sm:$0xf]
        %v180 = vld [vmem:[%s0 + $0x28] sm:$0xf]
        %v181 = vld [vmem:[%s0 + $0x2c] sm:$0xf]
        %v182 = vld [vmem:[%s0 + $0x30] sm:$0xf]
        %v183 = vld [vmem:[%s0 + $0x34] sm:$0xf]
        %v184 = vld [vmem:[%s0 + $0x38] sm:$0xf]
        %v185 = vld [vmem:[%s0 + $0x3c] sm:$0xf]
        %v186 = vld [vmem:[%s168] sm:$0xff]
        %v187 = vld [vmem:[%s168 + $0x8] sm:$0xff]
        %v188 = vld [vmem:[%s168 + $0x10] sm:$0xff]
        %v189 = vld [vmem:[%s168 + $0x18] sm:$0xff]
        %v190 = vld [vmem:[%s1] sm:$0xff]
        %v191 = vld [vmem:[%s1 + $0x8] sm:$0xff]
        %v192 = vld [vmem:[%s1 + $0x10] sm:$0xff]
        %v193 = vld [vmem:[%s1 + $0x18] sm:$0xff]
        %v194 = vld [vmem:[%s1 + $0x20] sm:$0xff]
        %v195 = vld [vmem:[%s1 + $0x28] sm:$0xff]
        %v196 = vld [vmem:[%s1 + $0x30] sm:$0xff]
        %v197 = vld [vmem:[%s1 + $0x38] sm:$0xff]
        %v198 = vld [vmem:[%s1 + $0x40] sm:$0xff]
        %v199 = vld [vmem:[%s1 + $0x48] sm:$0xff]
        %v200 = vld [vmem:[%s1 + $0x50] sm:$0xff]
        %v201 = vld [vmem:[%s1 + $0x58] sm:$0xff]
        %v202 = vld [vmem:[%s1 + $0x60] sm:$0xff]
        %v203 = vld [vmem:[%s1 + $0x68] sm:$0xff]
        %v204 = vld [vmem:[%s1 + $0x70] sm:$0xff]
        %v205 = vld [vmem:[%s1 + $0x78] sm:$0xff]
        %207 = vset.pattern.permute.xlu0 0
        %208 = vperm.xlu0 %207, %v190
        %v209 = vpop.permute.xlu0 %208
        %212 = vset.pattern.permute.xlu0 0
        %213 = vperm.xlu0 %212, %v191
        %v214 = vpop.permute.xlu0 %213
        %217 = vset.pattern.permute.xlu0 0
        %218 = vperm.xlu0 %217, %v192
        %v219 = vpop.permute.xlu0 %218
        %222 = vset.pattern.permute.xlu0 0
        %223 = vperm.xlu0 %222, %v193
        %v224 = vpop.permute.xlu0 %223
        %227 = vset.pattern.permute.xlu0 0
        %228 = vperm.xlu0 %227, %v194
        %v229 = vpop.permute.xlu0 %228
        %232 = vset.pattern.permute.xlu0 0
        %233 = vperm.xlu0 %232, %v195
        %v234 = vpop.permute.xlu0 %233
        %237 = vset.pattern.permute.xlu0 0
        %238 = vperm.xlu0 %237, %v196
        %v239 = vpop.permute.xlu0 %238
        %242 = vset.pattern.permute.xlu0 0
        %243 = vperm.xlu0 %242, %v197
        %v244 = vpop.permute.xlu0 %243
        %247 = vset.pattern.permute.xlu0 0
        %248 = vperm.xlu0 %247, %v198
        %v249 = vpop.permute.xlu0 %248
        %252 = vset.pattern.permute.xlu0 0
        %253 = vperm.xlu0 %252, %v199
        %v254 = vpop.permute.xlu0 %253
        %257 = vset.pattern.permute.xlu0 0
        %258 = vperm.xlu0 %257, %v200
        %v259 = vpop.permute.xlu0 %258
        %262 = vset.pattern.permute.xlu0 0
        %263 = vperm.xlu0 %262, %v201
        %v264 = vpop.permute.xlu0 %263
        %267 = vset.pattern.permute.xlu0 0
        %268 = vperm.xlu0 %267, %v202
        %v269 = vpop.permute.xlu0 %268
        %272 = vset.pattern.permute.xlu0 0
        %273 = vperm.xlu0 %272, %v203
        %v274 = vpop.permute.xlu0 %273
        %277 = vset.pattern.permute.xlu0 0
        %278 = vperm.xlu0 %277, %v204
        %v279 = vpop.permute.xlu0 %278
        %282 = vset.pattern.permute.xlu0 0
        %283 = vperm.xlu0 %282, %v205
        %v284 = vpop.permute.xlu0 %283
        %v302 = vunpack.c.l.b16 %v170
        %v303 = vunpack.c.l.b16 %v171
        %v304 = vunpack.c.l.b16 %v172
        %v305 = vunpack.c.l.b16 %v173
        %v306 = vunpack.c.l.b16 %v174
        %v307 = vunpack.c.l.b16 %v175
        %v308 = vunpack.c.l.b16 %v176
        %v309 = vunpack.c.l.b16 %v177
        %v310 = vunpack.c.l.b16 %v178
        %v311 = vunpack.c.l.b16 %v179
        %v312 = vunpack.c.l.b16 %v180
        %v313 = vunpack.c.l.b16 %v181
        %v314 = vunpack.c.l.b16 %v182
        %v315 = vunpack.c.l.b16 %v183
        %v316 = vunpack.c.l.b16 %v184
        %v317 = vunpack.c.l.b16 %v185
        %v318 = vpack.c.b16 %v303, %v302
        %v319 = vpack.c.b16 %v305, %v304
        %v320 = vpack.c.b16 %v307, %v306
        %v321 = vpack.c.b16 %v309, %v308
        %v322 = vpack.c.b16 %v311, %v310
        %v323 = vpack.c.b16 %v313, %v312
        %v324 = vpack.c.b16 %v315, %v314
        %v325 = vpack.c.b16 %v317, %v316
        %v330 = vunpack.c.l.b16 %v186
        %v331 = vunpack.c.h.b16 %v186
        %v332 = vunpack.c.l.b16 %v187
        %v333 = vunpack.c.h.b16 %v187
        %v334 = vunpack.c.l.b16 %v188
        %v335 = vunpack.c.h.b16 %v188
        %v336 = vunpack.c.l.b16 %v189
        %v337 = vunpack.c.h.b16 %v189
        %v338 = vpack.c.b16 %v332, %v330
        %v339 = vpack.c.b16 %v333, %v331
        %v340 = vpack.c.b16 %v336, %v334
        %v341 = vpack.c.b16 %v337, %v335
        %vm346 = vcmask 261120
        %v348 = vsel %vm346, %v318, 0
        %v351 = vsel %vm346, %v319, 0
        %v354 = vsel %vm346, %v320, 0
        %v357 = vsel %vm346, %v321, 0
        %v360 = vsel %vm346, %v322, 0
        %v363 = vsel %vm346, %v323, 0
        %v366 = vsel %vm346, %v324, 0
        %v369 = vsel %vm346, %v325, 0
        %371 = vmatprep.subr.bf16.mxu0 %v339
        %372 = vmatpush1.bf16.msra.mxu0 %v338
        %373 = vmatprep.subr.bf16.mxu0 %v341
        %374 = vmatpush1.bf16.msra.mxu0 %v340
        %375 = vmatprep.subr.bf16.mxu0 0
        %376 = vmatpush1.bf16.msra.mxu0 0
        %377 = vmatprep.subr.bf16.mxu0 0
        %378 = vmatpush1.bf16.msra.mxu0 0
        %379 = vmatprep.subr.bf16.mxu0 0
        %380 = vmatpush1.bf16.msra.mxu0 0
        %381 = vmatprep.subr.bf16.mxu0 0
        %382 = vmatpush1.bf16.msra.mxu0 0
        %383 = vmatprep.subr.bf16.mxu0 0
        %384 = vmatpush1.bf16.msra.mxu0 0
        %385 = vmatprep.subr.bf16.mxu0 0
        %386 = vmatpush1.bf16.msra.mxu0 0
        %387 = vmatprep.subr.bf16.mxu0 0
        %388 = vmatpush1.bf16.msra.mxu0 0
        %389 = vmatprep.subr.bf16.mxu0 0
        %390 = vmatpush1.bf16.msra.mxu0 0
        %391 = vmatprep.subr.bf16.mxu0 0
        %392 = vmatpush1.bf16.msra.mxu0 0
        %393 = vmatprep.subr.bf16.mxu0 0
        %394 = vmatpush1.bf16.msra.mxu0 0
        %395 = vmatprep.subr.bf16.mxu0 0
        %396 = vmatpush1.bf16.msra.mxu0 0
        %397 = vmatprep.subr.bf16.mxu0 0
        %398 = vmatpush1.bf16.msra.mxu0 0
        %399 = vmatprep.subr.bf16.mxu0 0
        %400 = vmatpush1.bf16.msra.mxu0 0
        %401 = vmatprep.subr.bf16.mxu0 0
        %402 = vmatpush1.bf16.msra.mxu0 0
        %403 = vmatprep.mubr.bf16.mxu0 0
        %404 = vmatmul.mubr.bf16.gmra.mrb[0].mxu0 %v348
        %v405 = vpop.f32.mrb[0].mxu0
        %v406 = vadd.f32 %v209, %v405
        %v407 = vpop.f32.mrb[0].mxu0
        %v408 = vadd.f32 %v209, %v407
        %v409 = vpop.f32.mrb[0].mxu0
        %v410 = vadd.f32 %v214, %v409
        %v411 = vpop.f32.mrb[0].mxu0
        %v412 = vadd.f32 %v214, %v411
        %413 = vmatprep.mubr.bf16.mxu0 0
        %414 = vmatmul.mubr.bf16.gmra.mrb[0].mxu0 %v351
        %v415 = vpop.f32.mrb[0].mxu0
        %v416 = vadd.f32 %v219, %v415
        %v417 = vpop.f32.mrb[0].mxu0
        %v418 = vadd.f32 %v219, %v417
        %v419 = vpop.f32.mrb[0].mxu0
        %v420 = vadd.f32 %v224, %v419
        %v421 = vpop.f32.mrb[0].mxu0
        %v422 = vadd.f32 %v224, %v421
        %423 = vmatprep.mubr.bf16.mxu0 0
        %424 = vmatmul.mubr.bf16.gmra.mrb[0].mxu0 %v354
        %v425 = vpop.f32.mrb[0].mxu0
        %v426 = vadd.f32 %v229, %v425
        %v427 = vpop.f32.mrb[0].mxu0
        %v428 = vadd.f32 %v229, %v427
        %v429 = vpop.f32.mrb[0].mxu0
        %v430 = vadd.f32 %v234, %v429
        %v431 = vpop.f32.mrb[0].mxu0
        %v432 = vadd.f32 %v234, %v431
        %433 = vmatprep.mubr.bf16.mxu0 0
        %434 = vmatmul.mubr.bf16.gmra.mrb[0].mxu0 %v357
        %v435 = vpop.f32.mrb[0].mxu0
        %v436 = vadd.f32 %v239, %v435
        %v437 = vpop.f32.mrb[0].mxu0
        %v438 = vadd.f32 %v239, %v437
        %v439 = vpop.f32.mrb[0].mxu0
        %v440 = vadd.f32 %v244, %v439
        %v441 = vpop.f32.mrb[0].mxu0
        %v442 = vadd.f32 %v244, %v441
        %443 = vmatprep.mubr.bf16.mxu0 0
        %444 = vmatmul.mubr.bf16.gmra.mrb[0].mxu0 %v360
        %v445 = vpop.f32.mrb[0].mxu0
        %v446 = vadd.f32 %v249, %v445
        %v447 = vpop.f32.mrb[0].mxu0
        %v448 = vadd.f32 %v249, %v447
        %v449 = vpop.f32.mrb[0].mxu0
        %v450 = vadd.f32 %v254, %v449
        %v451 = vpop.f32.mrb[0].mxu0
        %v452 = vadd.f32 %v254, %v451
        %453 = vmatprep.mubr.bf16.mxu0 0
        %454 = vmatmul.mubr.bf16.gmra.mrb[0].mxu0 %v363
        %v455 = vpop.f32.mrb[0].mxu0
        %v456 = vadd.f32 %v259, %v455
        %v457 = vpop.f32.mrb[0].mxu0
        %v458 = vadd.f32 %v259, %v457
        %v459 = vpop.f32.mrb[0].mxu0
        %v460 = vadd.f32 %v264, %v459
        %v461 = vpop.f32.mrb[0].mxu0
        %v462 = vadd.f32 %v264, %v461
        %463 = vmatprep.mubr.bf16.mxu0 0
        %464 = vmatmul.mubr.bf16.gmra.mrb[0].mxu0 %v366
        %v465 = vpop.f32.mrb[0].mxu0
        %v466 = vadd.f32 %v269, %v465
        %v467 = vpop.f32.mrb[0].mxu0
        %v468 = vadd.f32 %v269, %v467
        %v469 = vpop.f32.mrb[0].mxu0
        %v470 = vadd.f32 %v274, %v469
        %v471 = vpop.f32.mrb[0].mxu0
        %v472 = vadd.f32 %v274, %v471
        %473 = vmatprep.mubr.bf16.mxu0 0
        %474 = vmatmul.mubr.bf16.gmra.mrb[0].mxu0 %v369
        %v475 = vpop.f32.mrb[0].mxu0
        %v476 = vadd.f32 %v279, %v475
        %v477 = vpop.f32.mrb[0].mxu0
        %v478 = vadd.f32 %v279, %v477
        %v479 = vpop.f32.mrb[0].mxu0
        %v480 = vadd.f32 %v284, %v479
        %v481 = vpop.f32.mrb[0].mxu0
        %v482 = vadd.f32 %v284, %v481
        %483 = vdwg.mxu0
        %484 = vst [vmem:[%s163] sm:$0xff] %v406
        %485 = vst [vmem:[%s163 + $0x8] sm:$0xff] %v408
        %486 = vst [vmem:[%s163 + $0x10] sm:$0xff] %v410
        %487 = vst [vmem:[%s163 + $0x18] sm:$0xff] %v412
        %488 = vst [vmem:[%s163 + $0x20] sm:$0xff] %v416
        %489 = vst [vmem:[%s163 + $0x28] sm:$0xff] %v418
        %490 = vst [vmem:[%s163 + $0x30] sm:$0xff] %v420
        %491 = vst [vmem:[%s163 + $0x38] sm:$0xff] %v422
        %492 = vst [vmem:[%s163 + $0x40] sm:$0xff] %v426
        %493 = vst [vmem:[%s163 + $0x48] sm:$0xff] %v428
        %494 = vst [vmem:[%s163 + $0x50] sm:$0xff] %v430
        %495 = vst [vmem:[%s163 + $0x58] sm:$0xff] %v432
        %496 = vst [vmem:[%s163 + $0x60] sm:$0xff] %v436
        %497 = vst [vmem:[%s163 + $0x68] sm:$0xff] %v438
        %498 = vst [vmem:[%s163 + $0x70] sm:$0xff] %v440
        %499 = vst [vmem:[%s163 + $0x78] sm:$0xff] %v442
        %500 = vst [vmem:[%s163 + $0x80] sm:$0xff] %v446
        %501 = vst [vmem:[%s163 + $0x88] sm:$0xff] %v448
        %502 = vst [vmem:[%s163 + $0x90] sm:$0xff] %v450
        %503 = vst [vmem:[%s163 + $0x98] sm:$0xff] %v452
        %504 = vst [vmem:[%s163 + $0xa0] sm:$0xff] %v456
        %505 = vst [vmem:[%s163 + $0xa8] sm:$0xff] %v458
        %506 = vst [vmem:[%s163 + $0xb0] sm:$0xff] %v460
        %507 = vst [vmem:[%s163 + $0xb8] sm:$0xff] %v462
        %508 = vst [vmem:[%s163 + $0xc0] sm:$0xff] %v466
        %509 = vst [vmem:[%s163 + $0xc8] sm:$0xff] %v468
        %510 = vst [vmem:[%s163 + $0xd0] sm:$0xff] %v470
        %511 = vst [vmem:[%s163 + $0xd8] sm:$0xff] %v472
        %512 = vst [vmem:[%s163 + $0xe0] sm:$0xff] %v476
        %513 = vst [vmem:[%s163 + $0xe8] sm:$0xff] %v478
        %514 = vst [vmem:[%s163 + $0xf0] sm:$0xff] %v480
        %515 = vst [vmem:[%s163 + $0xf8] sm:$0xff] %v482
        %s516 = sand.u32 %s93, 1
        %s517 = scalar_lea.sflag [#allocation3], %s516
        %s518 = sand.u32 %s93, 1
        %s519 = smul.addr %s518, 256
        %s520 = scalar_lea.vmem [#allocation2], %s519
        // Predicated region
        $region33: #{tpu_custom_call.1} parent=31 // pred_check
          %p521 = pneg %p103
        $region34: #{tpu_custom_call.1} parent=31 // pred_check_branch
          %523 = sbr.rel (%p521) target = $region36
        $region35: #{tpu_custom_call.1} parent=31 // pred_region
          %s525 = ssub.s32 4096, 4096
          %526 = vsyncadd %s517, %s525
          %s527 = smul.addr %s17, 32
          %s528 = smul.addr %s527, 128
          %s529 = scalar_lea.hbm %s3, %s528
          %s530 = sshll.u32 %s520, 4
          %s531 = int_to_ptr.vmem [resolvable:$true] %s530
          %536 = dma.vmem_to_hbm [thread:$0]  %s531, 4096, %s529, %s517, 256, 256, 16
        $region36: #{tpu_custom_call.1} parent=31 // pred_fallthru
          _
      $region32: #{tpu_custom_call.1} parent=5 // pred_fallthru
        _
      %p537 = scmp.le.s32.totalorder 2, %s12
      // Predicated region
      $region37: #{tpu_custom_call.1} parent=5 // pred_check
        %p538 = pneg %p537
      $region38: #{tpu_custom_call.1} parent=5 // pred_check_branch
        %540 = sbr.rel (%p538) target = $region40
      $region39: #{tpu_custom_call.1} parent=5 // pred_region
        %s541 = ssub.s32 %s12, 2
        // Predicated region
        $region41: #{tpu_custom_call.1} parent=39 // pred_check
          %p542 = pneg %p109
        $region42: #{tpu_custom_call.1} parent=39 // pred_check_branch
          %544 = sbr.rel (%p542) target = $region44
        $region43: #{tpu_custom_call.1} parent=39 // pred_region
          %s545 = sand.u32 %s94, 1
          %s546 = scalar_lea.sflag [#allocation3], %s545
          %s547 = sand.u32 %s94, 1
          %s548 = smul.addr %s547, 256
          %s549 = scalar_lea.vmem [#allocation2], %s548
          %550 = dma.done %s546, 4096
        $region44: #{tpu_custom_call.1} parent=39 // pred_fallthru
          _
      $region40: #{tpu_custom_call.1} parent=5 // pred_fallthru
        _
    $region6: #{tpu_custom_call.1} parent=1 // loop_footer
      %s16 = sadd.s32 1, %s12
    $region7: #{tpu_custom_call.1} parent=1 // loop_footer_branch
      %11 = sbr.rel target = $region3
    $region8: #{tpu_custom_call.1} parent=1 // loop_exit
      _
    %551 = vsyncpa [#allocation3], 1
    %s552 = scalar_lea.sflag [#allocation3], 1
    %553 = vsyncpa %s552, 1

</llo_original>
